<compile_context>
chip_gen: v7x
topology: tpu7x:2x2x1
jax: 0.10.0
libtpu: 0.0.40
codegen_flags: <defaults>
</compile_context>

<pallas_src>
import functools

import jax
import jax.numpy as jnp
from jax.experimental import pallas as pl
from jax.experimental.pallas import tpu as pltpu


def _shear_y_kernel(shift_ref, x_ref, o_ref, *, img_h):
    # shift_ref: (1, W) f32  -- per-column vertical source offset t(x); y_src = y + t(x)
    # x_ref/o_ref: (R, W)    -- R = G*img_h rows = G whole images stacked along sublanes
    rows, _ = x_ref.shape
    x = x_ref[...].astype(jnp.float32)

    t = shift_ref[...]                                   # (1, W)
    d0f = jnp.floor(t)
    frac = t - d0f                                       # bilinear fraction, in [0, 1)
    d0 = d0f.astype(jnp.int32)                           # (1, W) integer part of the shift

    # Local row index inside each image (blocks hold whole images).
    r_local = jax.lax.broadcasted_iota(jnp.int32, (rows, 1), 0) % img_h
    src0 = r_local + d0                                  # (R, W) source row of tap 0 (int32)
    valid0 = (src0 >= 0) & (src0 < img_h)
    valid1 = (src0 + 1 >= 0) & (src0 + 1 < img_h)        # tap 1 is one source row below

    # Per-lane vertical gather  shifted0[y, l] = x[(y + d0c[l]) mod R, l]  built as a
    # log2(2H) ladder of static sublane rolls (XLU) selected per lane (VPU).
    # d0 is clamped to [-H, H] for the roll amount only; any tap whose true (unclamped)
    # source row falls outside its image is zeroed by valid0/valid1, so the clamp is
    # harmless and reproduces the zero fill.
    d0c = jnp.clip(d0, -img_h, img_h)
    v = d0c + img_h                                      # in [0, 2H]; ladder bit pattern
    shifted0 = x
    init = img_h % rows                                  # total shift target: -d0c (mod R)
    if init:
        shifted0 = pltpu.roll(shifted0, shift=init, axis=0)
    for k in range((2 * img_h).bit_length()):
        amt = (rows - (1 << k) % rows) % rows            # == -2**k (mod R), non-negative
        if amt:
            rolled = pltpu.roll(shifted0, shift=amt, axis=0)
            bit = (jnp.right_shift(v, k) & 1) == 1       # (1, W) per-lane select
            shifted0 = jnp.where(bit, rolled, shifted0)
    # Second bilinear tap: one more source row down == one extra static roll by R-1.
    shifted1 = pltpu.roll(shifted0, shift=rows - 1, axis=0)

    w0 = jnp.where(valid0, 1.0 - frac, 0.0)              # masked bilinear weights (R, W)
    w1 = jnp.where(valid1, frac, 0.0)
    # TODO(synk): integer image dtypes (e.g. uint8) would need round-to-nearest here to
    # match torchvision bilinear; fine for the float path.
    o_ref[...] = (shifted0 * w0 + shifted1 * w1).astype(o_ref.dtype)


def _pick_images_per_block(n_images, img_h, img_w, dtype_bytes,
                           target_bytes=2 * 1024 * 1024):
    """Whole images stacked per row block.

    Constraints: divides n_images; (G*H) rows 8-aligned (or the full extent);
    <= ~2 MiB per buffer (v7x-safe with in+out double buffering); prefer leaving
    >= 2 grid steps so v7x's two TensorCores both get work.
    """
    candidates = [g for g in range(1, n_images + 1)
                  if n_images % g == 0 and ((g * img_h) % 8 == 0 or g == n_images)]
    if not candidates:
        return n_images
    fits = [g for g in candidates if g * img_h * img_w * dtype_bytes <= target_bytes]
    pool = fits if fits else candidates[:1]
    multi = [g for g in pool if n_images // g >= 2]
    return max(multi if multi else pool)


def shear_y_apply(x, m):
    """Bilinear y-shear about the image center (zero fill), one shear for the batch."""
    B, C, H, W = x.shape
    n_img = B * C
    g = _pick_images_per_block(n_img, H, W, jnp.dtype(x.dtype).itemsize)
    rows_per_block = g * H
    n_blocks = n_img // g

    x2d = x.reshape(n_img * H, W)        # free reshape: no transpose, 1 read + 1 write

    # torchvision inverse map: y_src = y + tan(shear) * (x - (W-1)/2)
    cx = (W - 1) * 0.5
    shift = (m * (jnp.arange(W, dtype=jnp.float32) - cx)).reshape(1, W)

    out2d = pl.pallas_call(
        functools.partial(_shear_y_kernel, img_h=H),
        out_shape=jax.ShapeDtypeStruct((n_img * H, W), x.dtype),
        grid_spec=pltpu.PrefetchScalarGridSpec(
            num_scalar_prefetch=0,
            grid=(n_blocks,),
            in_specs=[
                pl.BlockSpec((1, W), lambda i: (0, 0)),
                pl.BlockSpec((rows_per_block, W), lambda i: (i, 0)),
            ],
            out_specs=pl.BlockSpec((rows_per_block, W), lambda i: (i, 0)),
        ),
        compiler_params=pltpu.CompilerParams(
            dimension_semantics=("parallel",)),
    )(shift, x2d)
    return out2d.reshape(B, C, H, W)


@functools.partial(jax.jit, static_argnames=("value", "p"))
def shear_y_forward(x, key, *, value, p=0.5):
    """Pallas TPU equivalent of ShearY.forward (torch global RNG -> explicit jax key)."""
    k_apply, k_shear = jax.random.split(key)
    apply_flag = jax.random.uniform(k_apply) < p                  # torch.rand(1) < p
    # RandomAffine(shear=[0,0,0,value]): shear_x = 0, shear_y ~ U(0, value) degrees.
    shear_deg = jax.random.uniform(k_shear, (), minval=0.0, maxval=value)
    m = jnp.tan(jnp.deg2rad(shear_deg))
    # Gate the whole pallas_call: the skipped branch costs no HBM traffic.
    return jax.lax.cond(apply_flag, shear_y_apply, lambda x_, m_: x_, x, m)


def _shear_y_reference(x, m):
    """Pure-JAX reference (gather + clip + mask), independent of the kernel's path."""
    B, C, H, W = x.shape
    cx = (W - 1) * 0.5
    t = m * (jnp.arange(W, dtype=jnp.float32) - cx)               # (W,)
    d0 = jnp.floor(t)
    frac = t - d0
    src0 = jnp.arange(H, dtype=jnp.int32)[:, None] + d0.astype(jnp.int32)[None, :]

    def tap(src, w):
        valid = (src >= 0) & (src < H)
        gathered = jnp.take_along_axis(x, jnp.clip(src, 0, H - 1)[None, None, :, :], axis=2)
        return gathered * jnp.where(valid, w, 0.0)[None, None, :, :]

    return tap(src0, (1.0 - frac)[None, :]) + tap(src0 + 1, frac[None, :])


if __name__ == "__main__":
    key = jax.random.PRNGKey(0)
    k_x, k_fwd = jax.random.split(key)

    B, C, H, W = 2, 4, 16, 16
    value, p = 30.0, 0.5
    x = jax.random.normal(k_x, (B, C, H, W), jnp.float32)

    # Module-equivalent forward (random gate + random shear angle).
    out = shear_y_forward(x, k_fwd, value=value, p=p)
    out = jax.block_until_ready(out)
    assert out.shape == (B, C, H, W)

    # Reference with the exact same sampled parameters.
    k_apply, k_shear = jax.random.split(k_fwd)
    apply_flag = jax.random.uniform(k_apply) < p
    m = jnp.tan(jnp.deg2rad(jax.random.uniform(k_shear, (), minval=0.0, maxval=value)))
    ref = jnp.where(apply_flag, _shear_y_reference(x, m), x)
    assert jnp.allclose(out, ref, atol=1e-5, rtol=1e-5), "forward mismatch"

    # Also exercise the "transform applied" branch deterministically.
    m_on = jnp.tan(jnp.deg2rad(jnp.float32(17.5)))
    out_on = jax.block_until_ready(shear_y_apply(x, m_on))
    ref_on = _shear_y_reference(x, m_on)
    assert jnp.allclose(out_on, ref_on, atol=1e-5, rtol=1e-5), "shear branch mismatch"

    print("KERNEL_OK")
</pallas_src>

<mosaic_0001>
module attributes {stable_mosaic.version = 11 : i64} {
  func.func @_shear_y_kernel(%arg0: i32, %arg1: memref<1x16xf32, #tpu.memory_space<vmem>>, %arg2: memref<64x16xf32, #tpu.memory_space<vmem>>, %arg3: memref<64x16xf32, #tpu.memory_space<vmem>>) attributes {dimension_semantics = [#tpu.dimension_semantics<parallel>], iteration_bounds = array<i64: 2>, scalar_prefetch = 0 : i64, scratch_operands = 0 : i64, tpu.core_type = #tpu.core_type<tc>, window_params = [{pipeline_mode = #tpu.pipeline_mode<synchronous>, transform_indices = @transform_0, window_bounds = array<i64: 1, 16>}, {transform_indices = @transform_1, window_bounds = array<i64: 64, 16>}, {transform_indices = @transform_2, window_bounds = array<i64: 64, 16>}]} {
    %c0 = arith.constant 0 : index
    %c0_0 = arith.constant 0 : index
    %0 = vector.load %arg2[%c0, %c0_0] : memref<64x16xf32, #tpu.memory_space<vmem>>, vector<64x16xf32>
    %c0_1 = arith.constant 0 : index
    %c0_2 = arith.constant 0 : index
    %1 = vector.load %arg1[%c0_1, %c0_2] : memref<1x16xf32, #tpu.memory_space<vmem>>, vector<1x16xf32>
    %2 = math.floor %1 : vector<1x16xf32>
    %3 = arith.subf %1, %2 : vector<1x16xf32>
    %4 = arith.fptosi %2 : vector<1x16xf32> to vector<1x16xi32>
    %5 = tpu.iota {dimensions = array<i32: 0>} : vector<64x1xi32>
    %c16_i32 = arith.constant 16 : i32
    %c0_i32 = arith.constant 0 : i32
    %6 = arith.cmpi eq, %c16_i32, %c0_i32 : i32
    %c1_i32 = arith.constant 1 : i32
    %7 = arith.select %6, %c1_i32, %c16_i32 : i32
    %8 = vector.broadcast %7 : i32 to vector<64x1xi32>
    %9 = arith.remsi %5, %8 : vector<64x1xi32>
    %c0_i32_3 = arith.constant 0 : i32
    %10 = vector.broadcast %c0_i32_3 : i32 to vector<64x1xi32>
    %11 = arith.cmpi ne, %9, %10 : vector<64x1xi32>
    %c0_i32_4 = arith.constant 0 : i32
    %12 = vector.broadcast %c0_i32_4 : i32 to vector<64x1xi32>
    %13 = arith.cmpi slt, %9, %12 : vector<64x1xi32>
    %c0_i32_5 = arith.constant 0 : i32
    %14 = arith.cmpi slt, %7, %c0_i32_5 : i32
    %15 = vector.broadcast %14 : i1 to vector<64x1xi1>
    %16 = vector.broadcast %15 : vector<64x1xi1> to vector<64x1xi1>
    %17 = arith.xori %13, %16 : vector<64x1xi1>
    %18 = arith.andi %17, %11 : vector<64x1xi1>
    %19 = vector.broadcast %7 : i32 to vector<64x1xi32>
    %20 = arith.addi %9, %19 : vector<64x1xi32>
    %21 = arith.select %18, %20, %9 : vector<64x1xi1>, vector<64x1xi32>
    %22 = vector.broadcast %21 : vector<64x1xi32> to vector<64x16xi32>
    %23 = vector.broadcast %4 : vector<1x16xi32> to vector<64x16xi32>
    %24 = arith.addi %22, %23 : vector<64x16xi32>
    %c0_i32_6 = arith.constant 0 : i32
    %25 = vector.broadcast %c0_i32_6 : i32 to vector<64x16xi32>
    %26 = arith.cmpi sge, %24, %25 : vector<64x16xi32>
    %c16_i32_7 = arith.constant 16 : i32
    %27 = vector.broadcast %c16_i32_7 : i32 to vector<64x16xi32>
    %28 = arith.cmpi slt, %24, %27 : vector<64x16xi32>
    %29 = arith.andi %26, %28 : vector<64x16xi1>
    %c1_i32_8 = arith.constant 1 : i32
    %30 = vector.broadcast %c1_i32_8 : i32 to vector<64x16xi32>
    %31 = arith.addi %24, %30 : vector<64x16xi32>
    %c0_i32_9 = arith.constant 0 : i32
    %32 = vector.broadcast %c0_i32_9 : i32 to vector<64x16xi32>
    %33 = arith.cmpi sge, %31, %32 : vector<64x16xi32>
    %c1_i32_10 = arith.constant 1 : i32
    %34 = vector.broadcast %c1_i32_10 : i32 to vector<64x16xi32>
    %35 = arith.addi %24, %34 : vector<64x16xi32>
    %c16_i32_11 = arith.constant 16 : i32
    %36 = vector.broadcast %c16_i32_11 : i32 to vector<64x16xi32>
    %37 = arith.cmpi slt, %35, %36 : vector<64x16xi32>
    %38 = arith.andi %33, %37 : vector<64x16xi1>
    %c-16_i32 = arith.constant -16 : i32
    %c16_i32_12 = arith.constant 16 : i32
    %39 = vector.broadcast %c-16_i32 : i32 to vector<1x16xi32>
    %40 = arith.maxsi %39, %4 : vector<1x16xi32>
    %41 = vector.broadcast %c16_i32_12 : i32 to vector<1x16xi32>
    %42 = arith.minsi %41, %40 : vector<1x16xi32>
    %c16_i32_13 = arith.constant 16 : i32
    %43 = vector.broadcast %c16_i32_13 : i32 to vector<1x16xi32>
    %44 = arith.addi %42, %43 : vector<1x16xi32>
    %c16_i32_14 = arith.constant 16 : i32
    %45 = tpu.dynamic_rotate %0 by %c16_i32_14 dim 0 : vector<64x16xf32>, i32 -> vector<64x16xf32>
    %c63_i32 = arith.constant 63 : i32
    %46 = tpu.dynamic_rotate %45 by %c63_i32 dim 0 : vector<64x16xf32>, i32 -> vector<64x16xf32>
    %c0_i32_15 = arith.constant 0 : i32
    %47 = vector.broadcast %c0_i32_15 : i32 to vector<1x16xi32>
    %48 = arith.shrsi %44, %47 : vector<1x16xi32>
    %c1_i32_16 = arith.constant 1 : i32
    %49 = vector.broadcast %c1_i32_16 : i32 to vector<1x16xi32>
    %50 = arith.andi %48, %49 : vector<1x16xi32>
    %c1_i32_17 = arith.constant 1 : i32
    %51 = vector.broadcast %c1_i32_17 : i32 to vector<1x16xi32>
    %52 = arith.cmpi eq, %50, %51 : vector<1x16xi32>
    %53 = vector.shape_cast %52 : vector<1x16xi1> to vector<1x16xi1>
    %54 = vector.broadcast %53 : vector<1x16xi1> to vector<64x16xi1>
    %55 = arith.select %54, %46, %45 : vector<64x16xi1>, vector<64x16xf32>
    %c62_i32 = arith.constant 62 : i32
    %56 = tpu.dynamic_rotate %55 by %c62_i32 dim 0 : vector<64x16xf32>, i32 -> vector<64x16xf32>
    %c1_i32_18 = arith.constant 1 : i32
    %57 = vector.broadcast %c1_i32_18 : i32 to vector<1x16xi32>
    %58 = arith.shrsi %44, %57 : vector<1x16xi32>
    %c1_i32_19 = arith.constant 1 : i32
    %59 = vector.broadcast %c1_i32_19 : i32 to vector<1x16xi32>
    %60 = arith.andi %58, %59 : vector<1x16xi32>
    %c1_i32_20 = arith.constant 1 : i32
    %61 = vector.broadcast %c1_i32_20 : i32 to vector<1x16xi32>
    %62 = arith.cmpi eq, %60, %61 : vector<1x16xi32>
    %63 = vector.shape_cast %62 : vector<1x16xi1> to vector<1x16xi1>
    %64 = vector.broadcast %63 : vector<1x16xi1> to vector<64x16xi1>
    %65 = arith.select %64, %56, %55 : vector<64x16xi1>, vector<64x16xf32>
    %c60_i32 = arith.constant 60 : i32
    %66 = tpu.dynamic_rotate %65 by %c60_i32 dim 0 : vector<64x16xf32>, i32 -> vector<64x16xf32>
    %c2_i32 = arith.constant 2 : i32
    %67 = vector.broadcast %c2_i32 : i32 to vector<1x16xi32>
    %68 = arith.shrsi %44, %67 : vector<1x16xi32>
    %c1_i32_21 = arith.constant 1 : i32
    %69 = vector.broadcast %c1_i32_21 : i32 to vector<1x16xi32>
    %70 = arith.andi %68, %69 : vector<1x16xi32>
    %c1_i32_22 = arith.constant 1 : i32
    %71 = vector.broadcast %c1_i32_22 : i32 to vector<1x16xi32>
    %72 = arith.cmpi eq, %70, %71 : vector<1x16xi32>
    %73 = vector.shape_cast %72 : vector<1x16xi1> to vector<1x16xi1>
    %74 = vector.broadcast %73 : vector<1x16xi1> to vector<64x16xi1>
    %75 = arith.select %74, %66, %65 : vector<64x16xi1>, vector<64x16xf32>
    %c56_i32 = arith.constant 56 : i32
    %76 = tpu.dynamic_rotate %75 by %c56_i32 dim 0 : vector<64x16xf32>, i32 -> vector<64x16xf32>
    %c3_i32 = arith.constant 3 : i32
    %77 = vector.broadcast %c3_i32 : i32 to vector<1x16xi32>
    %78 = arith.shrsi %44, %77 : vector<1x16xi32>
    %c1_i32_23 = arith.constant 1 : i32
    %79 = vector.broadcast %c1_i32_23 : i32 to vector<1x16xi32>
    %80 = arith.andi %78, %79 : vector<1x16xi32>
    %c1_i32_24 = arith.constant 1 : i32
    %81 = vector.broadcast %c1_i32_24 : i32 to vector<1x16xi32>
    %82 = arith.cmpi eq, %80, %81 : vector<1x16xi32>
    %83 = vector.shape_cast %82 : vector<1x16xi1> to vector<1x16xi1>
    %84 = vector.broadcast %83 : vector<1x16xi1> to vector<64x16xi1>
    %85 = arith.select %84, %76, %75 : vector<64x16xi1>, vector<64x16xf32>
    %c48_i32 = arith.constant 48 : i32
    %86 = tpu.dynamic_rotate %85 by %c48_i32 dim 0 : vector<64x16xf32>, i32 -> vector<64x16xf32>
    %c4_i32 = arith.constant 4 : i32
    %87 = vector.broadcast %c4_i32 : i32 to vector<1x16xi32>
    %88 = arith.shrsi %44, %87 : vector<1x16xi32>
    %c1_i32_25 = arith.constant 1 : i32
    %89 = vector.broadcast %c1_i32_25 : i32 to vector<1x16xi32>
    %90 = arith.andi %88, %89 : vector<1x16xi32>
    %c1_i32_26 = arith.constant 1 : i32
    %91 = vector.broadcast %c1_i32_26 : i32 to vector<1x16xi32>
    %92 = arith.cmpi eq, %90, %91 : vector<1x16xi32>
    %93 = vector.shape_cast %92 : vector<1x16xi1> to vector<1x16xi1>
    %94 = vector.broadcast %93 : vector<1x16xi1> to vector<64x16xi1>
    %95 = arith.select %94, %86, %85 : vector<64x16xi1>, vector<64x16xf32>
    %c32_i32 = arith.constant 32 : i32
    %96 = tpu.dynamic_rotate %95 by %c32_i32 dim 0 : vector<64x16xf32>, i32 -> vector<64x16xf32>
    %c5_i32 = arith.constant 5 : i32
    %97 = vector.broadcast %c5_i32 : i32 to vector<1x16xi32>
    %98 = arith.shrsi %44, %97 : vector<1x16xi32>
    %c1_i32_27 = arith.constant 1 : i32
    %99 = vector.broadcast %c1_i32_27 : i32 to vector<1x16xi32>
    %100 = arith.andi %98, %99 : vector<1x16xi32>
    %c1_i32_28 = arith.constant 1 : i32
    %101 = vector.broadcast %c1_i32_28 : i32 to vector<1x16xi32>
    %102 = arith.cmpi eq, %100, %101 : vector<1x16xi32>
    %103 = vector.shape_cast %102 : vector<1x16xi1> to vector<1x16xi1>
    %104 = vector.broadcast %103 : vector<1x16xi1> to vector<64x16xi1>
    %105 = arith.select %104, %96, %95 : vector<64x16xi1>, vector<64x16xf32>
    %c63_i32_29 = arith.constant 63 : i32
    %106 = tpu.dynamic_rotate %105 by %c63_i32_29 dim 0 : vector<64x16xf32>, i32 -> vector<64x16xf32>
    %cst = arith.constant 1.000000e+00 : f32
    %107 = vector.broadcast %cst : f32 to vector<1x16xf32>
    %108 = arith.subf %107, %3 : vector<1x16xf32>
    %cst_30 = arith.constant 0.000000e+00 : f32
    %109 = vector.shape_cast %108 : vector<1x16xf32> to vector<1x16xf32>
    %110 = vector.broadcast %109 : vector<1x16xf32> to vector<64x16xf32>
    %111 = vector.broadcast %cst_30 : f32 to vector<64x16xf32>
    %112 = arith.select %29, %110, %111 : vector<64x16xi1>, vector<64x16xf32>
    %cst_31 = arith.constant 0.000000e+00 : f32
    %113 = vector.shape_cast %3 : vector<1x16xf32> to vector<1x16xf32>
    %114 = vector.broadcast %113 : vector<1x16xf32> to vector<64x16xf32>
    %115 = vector.broadcast %cst_31 : f32 to vector<64x16xf32>
    %116 = arith.select %38, %114, %115 : vector<64x16xi1>, vector<64x16xf32>
    %117 = arith.mulf %105, %112 : vector<64x16xf32>
    %118 = arith.mulf %106, %116 : vector<64x16xf32>
    %119 = arith.addf %117, %118 : vector<64x16xf32>
    %c0_32 = arith.constant 0 : index
    %c0_33 = arith.constant 0 : index
    %120 = vector.load %arg3[%c0_32, %c0_33] : memref<64x16xf32, #tpu.memory_space<vmem>>, vector<64x16xf32>
    tpu.vector_store %arg3[%c0_32, %c0_33], %119 {strides = array<i32>} : memref<64x16xf32, #tpu.memory_space<vmem>>, vector<64x16xf32>,
    return
  }
  func.func @transform_0(%arg0: i32) -> (i32, i32) {
    %c0_i32 = arith.constant 0 : i32
    %c0_i32_0 = arith.constant 0 : i32
    %c0_i32_1 = arith.constant 0 : i32
    return %c0_i32, %c0_i32_0 : i32, i32
  }
  func.func @transform_1(%arg0: i32) -> (i32, i32) {
    %c0_i32 = arith.constant 0 : i32
    %c0_i32_0 = arith.constant 0 : i32
    return %arg0, %c0_i32 : i32, i32
  }
  func.func @transform_2(%arg0: i32) -> (i32, i32) {
    %c0_i32 = arith.constant 0 : i32
    %c0_i32_0 = arith.constant 0 : i32
    return %arg0, %c0_i32 : i32, i32
  }
}

</mosaic_0001>

<llo_original>
// kernel: branch_1_fun.1
$region0: #{branch_1_fun.1}
  #allocation0 [shape = 'u32[]', space=smem, size = 0x4, offset = 0x4, fixed_abs, tag = 'smem constant byte address 0x4 - core index']
  #allocation1 [shape = 'u32[144,128]{1,0:T(1,128)}', space=vmem, size = 0x12000, scoped, tag = 'internal scratch']
  %s0 = inlined_call_operand.vmem [shape: f32[1,16], index: 0, kind: input, shape index: {}]
  %s1 = inlined_call_operand.vmem [shape: f32[128,16], index: 1, kind: input, shape index: {}]
  %s2 = inlined_call_operand.hbm [shape: f32[128,16], index: 2, kind: output, shape index: {}]
  %s3 = sld [smem:[#allocation0]]
  $region41: #{branch_1_fun.1} parent=0
    _
  %s5 = ssub.s32 1, %s3
  %s6 = scalar_select 0, %s5, %s3
  $region1: #{branch_1_fun.1} parent=0
    #allocation2 [shape = 'u8[65536]{0}', space=vmem, size = 0x10000, scoped, tag = 'output window, operand 0']
    #allocation3 [shape = 's32[2]{0}', space=sflag, size = 0x8, scoped, tag = 'scoped memory for branch_1_fun.1']
    %7 = vsyncpa [#allocation3], 0
    %s8 = scalar_lea.sflag [#allocation3], 1
    %9 = vsyncpa %s8, 0
    loop: start=0, step=1, limit=4
    $region2: #{branch_1_fun.1} parent=1 // loop_pre_header
      _
    $region3: #{branch_1_fun.1} parent=1 // loop_header
      %s11 = sphi 0, %s15
      %p12 = scmp.ge.s32.totalorder %s11, 4
      %s19 = sphi 0, %s19
      %s21 = sphi 0, %s19
      %s22 = sphi 0, %s21
      %s36 = sphi 0, %s22
      %s42 = sphi 0, %s44
      %s45 = sphi 0, %s42
      %s46 = sphi 0, %s45
      %s62 = sphi 0, %s46
      %s68 = sphi 0, %s70
      %s71 = sphi 0, %s68
      %s72 = sphi 0, %s71
      %s88 = sphi 0, %s72
    $region4: #{branch_1_fun.1} parent=1 // loop_header_branch
      %14 = sbr.rel (%p12) target = $region8
    $region5: #{branch_1_fun.1} parent=1 // loop_body
      %s16 = ssub.s32 %s11, 1
      %s17 = ssub.s32 %s11, 2
      %s18 = sadd.s32 %s11, 1
      %s20 = sadd.s32 %s19, 1
      %p23 = scmp.eq.s32.totalorder %s11, 1
      %p24 = scmp.ne.s32.totalorder %s19, %s21
      %p25 = scmp.eq.s32.totalorder %s11, 0
      %p26 = por %p24, %p25
      %p27 = scmp.ne.s32.totalorder %s19, %s21
      %p28 = scmp.eq.s32.totalorder %s16, 1
      %p29 = por %p27, %p28
      %p30 = scmp.ne.s32.totalorder %s21, %s22
      %p31 = scmp.eq.s32.totalorder %s16, 0
      %p32 = por %p30, %p31
      %p33 = scmp.ne.s32.totalorder %s21, %s22
      %p34 = scmp.eq.s32.totalorder %s17, 1
      %p35 = por %p33, %p34
      %p37 = scmp.ne.s32.totalorder %s22, %s36
      %p38 = scmp.eq.s32.totalorder %s17, 0
      %p39 = por %p37, %p38
      %s40 = ssub.s32 %s11, %s18
      %p41 = scmp.eq.s32.totalorder %s40, 0
      %s43 = sadd.s32 %s42, 1
      %s44 = scalar_select %p41, %s42, %s43
      %p47 = pneg %p41
      %p48 = scmp.eq.s32.totalorder %s11, 1
      %p49 = por %p47, %p48
      %p50 = scmp.ne.s32.totalorder %s42, %s45
      %p51 = scmp.eq.s32.totalorder %s11, 0
      %p52 = por %p50, %p51
      %p53 = scmp.ne.s32.totalorder %s42, %s45
      %p54 = scmp.eq.s32.totalorder %s16, 1
      %p55 = por %p53, %p54
      %p56 = scmp.ne.s32.totalorder %s45, %s46
      %p57 = scmp.eq.s32.totalorder %s16, 0
      %p58 = por %p56, %p57
      %p59 = scmp.ne.s32.totalorder %s45, %s46
      %p60 = scmp.eq.s32.totalorder %s17, 1
      %p61 = por %p59, %p60
      %p63 = scmp.ne.s32.totalorder %s46, %s62
      %p64 = scmp.eq.s32.totalorder %s17, 0
      %p65 = por %p63, %p64
      %s66 = ssub.s32 %s11, %s18
      %p67 = scmp.eq.s32.totalorder %s66, 0
      %s69 = sadd.s32 %s68, 1
      %s70 = scalar_select %p67, %s68, %s69
      %p73 = pneg %p67
      %p74 = scmp.eq.s32.totalorder %s11, 1
      %p75 = por %p73, %p74
      %p76 = scmp.ne.s32.totalorder %s68, %s71
      %p77 = scmp.eq.s32.totalorder %s11, 0
      %p78 = por %p76, %p77
      %p79 = scmp.ne.s32.totalorder %s68, %s71
      %p80 = scmp.eq.s32.totalorder %s16, 1
      %p81 = por %p79, %p80
      %p82 = scmp.ne.s32.totalorder %s71, %s72
      %p83 = scmp.eq.s32.totalorder %s16, 0
      %p84 = por %p82, %p83
      %p85 = scmp.ne.s32.totalorder %s71, %s72
      %p86 = scmp.eq.s32.totalorder %s17, 1
      %p87 = por %p85, %p86
      %p89 = scmp.ne.s32.totalorder %s72, %s88
      %p90 = scmp.eq.s32.totalorder %s17, 0
      %p91 = por %p89, %p90
      %p92 = scmp.le.s32.totalorder 1, %s11
      %p93 = scmp.lt.s32.totalorder %s11, 3
      %p94 = pnand %p92, %p93
      %p95 = pneg %p94
      // Predicated region
      $region9: #{branch_1_fun.1} parent=5 // pred_check
        _
      $region10: #{branch_1_fun.1} parent=5 // pred_check_branch
        %97 = sbr.rel (%p94) target = $region12
      $region11: #{branch_1_fun.1} parent=5 // pred_region
        %s98 = ssub.s32 %s11, 1
        // Predicated region
        $region13: #{branch_1_fun.1} parent=11 // pred_check
          %p99 = pneg %p32
        $region14: #{branch_1_fun.1} parent=11 // pred_check_branch
          %101 = sbr.rel (%p99) target = $region16
        $region15: #{branch_1_fun.1} parent=11 // pred_region
          _
        $region16: #{branch_1_fun.1} parent=11 // pred_fallthru
          _
      $region12: #{branch_1_fun.1} parent=5 // pred_fallthru
        _
      %p102 = scmp.lt.s32.totalorder %s11, 2
      // Predicated region
      $region17: #{branch_1_fun.1} parent=5 // pred_check
        %p103 = pneg %p102
      $region18: #{branch_1_fun.1} parent=5 // pred_check_branch
        %105 = sbr.rel (%p103) target = $region20
      $region19: #{branch_1_fun.1} parent=5 // pred_region
        // Predicated region
        $region21: #{branch_1_fun.1} parent=19 // pred_check
          %p106 = pneg %p52
        $region22: #{branch_1_fun.1} parent=19 // pred_check_branch
          %108 = sbr.rel (%p106) target = $region24
        $region23: #{branch_1_fun.1} parent=19 // pred_region
          %s109 = smul.u32 8, %s11
          %p110 = scmp.lt.s32.totalorder %s109, 15
          %s111 = scalar_select %p110, %s109, 15
          %s112 = smul.addr %s111, 8
          %s113 = scalar_lea.vmem %s1, %s112
          %s114 = smul.u32 8, %s11
        $region24: #{branch_1_fun.1} parent=19 // pred_fallthru
          _
      $region20: #{branch_1_fun.1} parent=5 // pred_fallthru
        _
      %p115 = scmp.le.s32.totalorder 1, %s11
      %p116 = scmp.lt.s32.totalorder %s11, 3
      %p117 = pnand %p115, %p116
      %p118 = pneg %p117
      // Predicated region
      $region25: #{branch_1_fun.1} parent=5 // pred_check
        _
      $region26: #{branch_1_fun.1} parent=5 // pred_check_branch
        %120 = sbr.rel (%p117) target = $region28
      $region27: #{branch_1_fun.1} parent=5 // pred_region
        %s121 = ssub.s32 %s11, 1
        %p122 = pneg %p32
        %p123 = pneg %p29
        %s124 = smul.u32 8, %s16
        %p125 = scmp.lt.s32.totalorder %s124, 15
        %s126 = scalar_select %p125, %s124, 15
        %s127 = smul.addr %s126, 8
        %s128 = scalar_lea.vmem %s1, %s127
        %p129 = pneg %p58
        %p130 = pneg %p55
        %p131 = pneg %p84
        %p132 = pneg %p81
        %s133 = sand.u32 %s71, 1
        %s134 = scalar_lea.sflag [#allocation3], %s133
        %s135 = sand.u32 %s71, 1
        %s136 = smul.addr %s135, 64
        %s137 = scalar_lea.vmem [#allocation2], %s136
        %s138 = smul.u32 8, %s16
        %p139 = scmp.lt.s32.totalorder %s138, 15
        %s140 = scalar_select %p139, %s138, 15
        %s141 = smul.addr %s140, 8
        %s142 = scalar_lea.vmem %s1, %s141
        %s143 = smul.u32 8, %s16
        %s144 = smul.u32 8, %s16
        %v145 = vld [vmem:[%s142] sm:$0xff]
        %v146 = vld [vmem:[%s142 + $0x8] sm:$0xff]
        %v147 = vld [vmem:[%s142 + $0x10] sm:$0xff]
        %v148 = vld [vmem:[%s142 + $0x18] sm:$0xff]
        %v149 = vld [vmem:[%s142 + $0x20] sm:$0xff]
        %v150 = vld [vmem:[%s142 + $0x28] sm:$0xff]
        %v151 = vld [vmem:[%s142 + $0x30] sm:$0xff]
        %v152 = vld [vmem:[%s142 + $0x38] sm:$0xff]
        %v153 = vld [vmem:[%s0] sm:$0x1]
        %v154 = vfloor.f32 %v153
        %v155 = vsub.f32 %v153, %v154
        %v156 = vcvt.f32.s32.to.zero.pseudo %v154
        %v157 = vlaneseq
        %v158 = vshrl.u32 %v157, 7
        %v159 = vadd.s32 %v158, 8
        %v160 = vadd.s32 %v158, 16
        %v161 = vadd.s32 %v158, 24
        %v162 = vadd.s32 %v158, 32
        %v163 = vadd.s32 %v158, 40
        %v164 = vadd.s32 %v158, 48
        %v165 = vadd.s32 %v158, 56
        %vm166 = vcmp.lt.s32.totalorder %v158, 0
        %v167 = vsub.s32 0, %v158
        %v168 = vsel %vm166, %v167, %v158
        %v169 = vshrl.u32 %v168, 4
        %v170 = vand.u32 %v168, 15
        %v171 = vsub.s32 0, %v170
        %v172 = vsel %vm166, %v171, %v170
        %vm173 = vcmp.lt.s32.totalorder %v159, 0
        %v174 = vsub.s32 0, %v159
        %v175 = vsel %vm173, %v174, %v159
        %v176 = vshrl.u32 %v175, 4
        %v177 = vand.u32 %v175, 15
        %v178 = vsub.s32 0, %v177
        %v179 = vsel %vm173, %v178, %v177
        %vm180 = vcmp.lt.s32.totalorder %v160, 0
        %v181 = vsub.s32 0, %v160
        %v182 = vsel %vm180, %v181, %v160
        %v183 = vshrl.u32 %v182, 4
        %v184 = vand.u32 %v182, 15
        %v185 = vsub.s32 0, %v184
        %v186 = vsel %vm180, %v185, %v184
        %vm187 = vcmp.lt.s32.totalorder %v161, 0
        %v188 = vsub.s32 0, %v161
        %v189 = vsel %vm187, %v188, %v161
        %v190 = vshrl.u32 %v189, 4
        %v191 = vand.u32 %v189, 15
        %v192 = vsub.s32 0, %v191
        %v193 = vsel %vm187, %v192, %v191
        %vm194 = vcmp.lt.s32.totalorder %v162, 0
        %v195 = vsub.s32 0, %v162
        %v196 = vsel %vm194, %v195, %v162
        %v197 = vshrl.u32 %v196, 4
        %v198 = vand.u32 %v196, 15
        %v199 = vsub.s32 0, %v198
        %v200 = vsel %vm194, %v199, %v198
        %vm201 = vcmp.lt.s32.totalorder %v163, 0
        %v202 = vsub.s32 0, %v163
        %v203 = vsel %vm201, %v202, %v163
        %v204 = vshrl.u32 %v203, 4
        %v205 = vand.u32 %v203, 15
        %v206 = vsub.s32 0, %v205
        %v207 = vsel %vm201, %v206, %v205
        %vm208 = vcmp.lt.s32.totalorder %v164, 0
        %v209 = vsub.s32 0, %v164
        %v210 = vsel %vm208, %v209, %v164
        %v211 = vshrl.u32 %v210, 4
        %v212 = vand.u32 %v210, 15
        %v213 = vsub.s32 0, %v212
        %v214 = vsel %vm208, %v213, %v212
        %vm215 = vcmp.lt.s32.totalorder %v165, 0
        %v216 = vsub.s32 0, %v165
        %v217 = vsel %vm215, %v216, %v165
        %v218 = vshrl.u32 %v217, 4
        %v219 = vand.u32 %v217, 15
        %v220 = vsub.s32 0, %v219
        %v221 = vsel %vm215, %v220, %v219
        %vm222 = vcmp.ne.s32.totalorder %v172, 0
        %vm223 = vcmp.ne.s32.totalorder %v179, 0
        %vm224 = vcmp.ne.s32.totalorder %v186, 0
        %vm225 = vcmp.ne.s32.totalorder %v193, 0
        %vm226 = vcmp.ne.s32.totalorder %v200, 0
        %vm227 = vcmp.ne.s32.totalorder %v207, 0
        %vm228 = vcmp.ne.s32.totalorder %v214, 0
        %vm229 = vcmp.ne.s32.totalorder %v221, 0
        %vm230 = vcmp.lt.s32.totalorder %v172, 0
        %vm231 = vcmp.lt.s32.totalorder %v179, 0
        %vm232 = vcmp.lt.s32.totalorder %v186, 0
        %vm233 = vcmp.lt.s32.totalorder %v193, 0
        %vm234 = vcmp.lt.s32.totalorder %v200, 0
        %vm235 = vcmp.lt.s32.totalorder %v207, 0
        %vm236 = vcmp.lt.s32.totalorder %v214, 0
        %vm237 = vcmp.lt.s32.totalorder %v221, 0
        %vm238 = vmand %vm230, %vm222
        %vm239 = vmand %vm231, %vm223
        %vm240 = vmand %vm232, %vm224
        %vm241 = vmand %vm233, %vm225
        %vm242 = vmand %vm234, %vm226
        %vm243 = vmand %vm235, %vm227
        %vm244 = vmand %vm236, %vm228
        %vm245 = vmand %vm237, %vm229
        %v246 = vadd.s32 %v172, 16
        %v247 = vadd.s32 %v179, 16
        %v248 = vadd.s32 %v186, 16
        %v249 = vadd.s32 %v193, 16
        %v250 = vadd.s32 %v200, 16
        %v251 = vadd.s32 %v207, 16
        %v252 = vadd.s32 %v214, 16
        %v253 = vadd.s32 %v221, 16
        %v254 = vsel %vm238, %v246, %v172
        %v255 = vsel %vm239, %v247, %v179
        %v256 = vsel %vm240, %v248, %v186
        %v257 = vsel %vm241, %v249, %v193
        %v258 = vsel %vm242, %v250, %v200
        %v259 = vsel %vm243, %v251, %v207
        %v260 = vsel %vm244, %v252, %v214
        %v261 = vsel %vm245, %v253, %v221
        %v262 = vlaneseq
        %v263 = vshrl.u32 %v262, 7
        %v264 = vsub.s32 0, %v263
        %v265 = vrot.slane %v156, %v264
        %v266 = vadd.s32 %v254, %v265
        %v267 = vadd.s32 %v255, %v265
        %v268 = vadd.s32 %v256, %v265
        %v269 = vadd.s32 %v257, %v265
        %v270 = vadd.s32 %v258, %v265
        %v271 = vadd.s32 %v259, %v265
        %v272 = vadd.s32 %v260, %v265
        %v273 = vadd.s32 %v261, %v265
        %vm274 = vcmp.ge.s32.totalorder %v266, 0
        %vm275 = vcmp.ge.s32.totalorder %v267, 0
        %vm276 = vcmp.ge.s32.totalorder %v268, 0
        %vm277 = vcmp.ge.s32.totalorder %v269, 0
        %vm278 = vcmp.ge.s32.totalorder %v270, 0
        %vm279 = vcmp.ge.s32.totalorder %v271, 0
        %vm280 = vcmp.ge.s32.totalorder %v272, 0
        %vm281 = vcmp.ge.s32.totalorder %v273, 0
        %vm282 = vcmp.lt.s32.totalorder %v266, 16
        %vm283 = vcmp.lt.s32.totalorder %v267, 16
        %vm284 = vcmp.lt.s32.totalorder %v268, 16
        %vm285 = vcmp.lt.s32.totalorder %v269, 16
        %vm286 = vcmp.lt.s32.totalorder %v270, 16
        %vm287 = vcmp.lt.s32.totalorder %v271, 16
        %vm288 = vcmp.lt.s32.totalorder %v272, 16
        %vm289 = vcmp.lt.s32.totalorder %v273, 16
        %vm290 = vmand %vm274, %vm282
        %vm291 = vmand %vm275, %vm283
        %vm292 = vmand %vm276, %vm284
        %vm293 = vmand %vm277, %vm285
        %vm294 = vmand %vm278, %vm286
        %vm295 = vmand %vm279, %vm287
        %vm296 = vmand %vm280, %vm288
        %vm297 = vmand %vm281, %vm289
        %v298 = vadd.s32 %v266, 1
        %v299 = vadd.s32 %v267, 1
        %v300 = vadd.s32 %v268, 1
        %v301 = vadd.s32 %v269, 1
        %v302 = vadd.s32 %v270, 1
        %v303 = vadd.s32 %v271, 1
        %v304 = vadd.s32 %v272, 1
        %v305 = vadd.s32 %v273, 1
        %vm306 = vcmp.ge.s32.totalorder %v298, 0
        %vm307 = vcmp.ge.s32.totalorder %v299, 0
        %vm308 = vcmp.ge.s32.totalorder %v300, 0
        %vm309 = vcmp.ge.s32.totalorder %v301, 0
        %vm310 = vcmp.ge.s32.totalorder %v302, 0
        %vm311 = vcmp.ge.s32.totalorder %v303, 0
        %vm312 = vcmp.ge.s32.totalorder %v304, 0
        %vm313 = vcmp.ge.s32.totalorder %v305, 0
        %vm314 = vcmp.lt.s32.totalorder %v298, 16
        %vm315 = vcmp.lt.s32.totalorder %v299, 16
        %vm316 = vcmp.lt.s32.totalorder %v300, 16
        %vm317 = vcmp.lt.s32.totalorder %v301, 16
        %vm318 = vcmp.lt.s32.totalorder %v302, 16
        %vm319 = vcmp.lt.s32.totalorder %v303, 16
        %vm320 = vcmp.lt.s32.totalorder %v304, 16
        %vm321 = vcmp.lt.s32.totalorder %v305, 16
        %vm322 = vmand %vm306, %vm314
        %vm323 = vmand %vm307, %vm315
        %vm324 = vmand %vm308, %vm316
        %vm325 = vmand %vm309, %vm317
        %vm326 = vmand %vm310, %vm318
        %vm327 = vmand %vm311, %vm319
        %vm328 = vmand %vm312, %vm320
        %vm329 = vmand %vm313, %vm321
        %vm330 = vcmp.gt.s32.totalorder %v156, 4294967280
        %v331 = vsel %vm330, %v156, 4294967280
        %vm332 = vcmp.lt.s32.totalorder %v331, 16
        %v333 = vsel %vm332, %v331, 16
        %v334 = vadd.s32 %v333, 16
        %v335 = vrot.slane %v151, 1
        %v336 = vrot.slane %v152, 1
        %v337 = vrot.slane %v145, 1
        %v338 = vrot.slane %v146, 1
        %v339 = vrot.slane %v147, 1
        %v340 = vrot.slane %v148, 1
        %v341 = vrot.slane %v149, 1
        %v342 = vrot.slane %v150, 1
        %vm343 = vcmp.lt.s32.totalorder %v158, 7
        %v344 = vsel %vm343, %v341, %v342
        %v345 = vsel %vm343, %v340, %v341
        %v346 = vsel %vm343, %v339, %v340
        %v347 = vsel %vm343, %v338, %v339
        %v348 = vsel %vm343, %v337, %v338
        %v349 = vsel %vm343, %v336, %v337
        %v350 = vsel %vm343, %v335, %v336
        %v351 = vsel %vm343, %v342, %v335
        %v352 = vand.u32 %v334, 1
        %vm353 = vcmp.eq.s32.totalorder %v352, 1
        %v354 = vsel %vm353, 1, 0
        %v355 = vlaneseq
        %v356 = vshrl.u32 %v355, 7
        %v357 = vsub.s32 0, %v356
        %v358 = vrot.slane %v354, %v357
        %vm359 = vcmp.eq.s32.totalorder %v358, 1
        %v360 = vsel %vm359, %v350, %v151
        %v361 = vsel %vm359, %v349, %v152
        %v362 = vsel %vm359, %v348, %v145
        %v363 = vsel %vm359, %v347, %v146
        %v364 = vsel %vm359, %v346, %v147
        %v365 = vsel %vm359, %v345, %v148
        %v366 = vsel %vm359, %v344, %v149
        %v367 = vsel %vm359, %v351, %v150
        %v368 = vrot.slane %v360, 2
        %v369 = vrot.slane %v361, 2
        %v370 = vrot.slane %v362, 2
        %v371 = vrot.slane %v363, 2
        %v372 = vrot.slane %v364, 2
        %v373 = vrot.slane %v365, 2
        %v374 = vrot.slane %v366, 2
        %v375 = vrot.slane %v367, 2
        %vm376 = vcmp.lt.s32.totalorder %v158, 6
        %v377 = vsel %vm376, %v374, %v375
        %v378 = vsel %vm376, %v373, %v374
        %v379 = vsel %vm376, %v372, %v373
        %v380 = vsel %vm376, %v371, %v372
        %v381 = vsel %vm376, %v370, %v371
        %v382 = vsel %vm376, %v369, %v370
        %v383 = vsel %vm376, %v368, %v369
        %v384 = vsel %vm376, %v375, %v368
        %v385 = vshra.s32 %v334, 1
        %v386 = vand.u32 %v385, 1
        %vm387 = vcmp.eq.s32.totalorder %v386, 1
        %v388 = vsel %vm387, 1, 0
        %v389 = vlaneseq
        %v390 = vshrl.u32 %v389, 7
        %v391 = vsub.s32 0, %v390
        %v392 = vrot.slane %v388, %v391
        %vm393 = vcmp.eq.s32.totalorder %v392, 1
        %v394 = vsel %vm393, %v383, %v360
        %v395 = vsel %vm393, %v382, %v361
        %v396 = vsel %vm393, %v381, %v362
        %v397 = vsel %vm393, %v380, %v363
        %v398 = vsel %vm393, %v379, %v364
        %v399 = vsel %vm393, %v378, %v365
        %v400 = vsel %vm393, %v377, %v366
        %v401 = vsel %vm393, %v384, %v367
        %v402 = vrot.slane %v394, 4
        %v403 = vrot.slane %v395, 4
        %v404 = vrot.slane %v396, 4
        %v405 = vrot.slane %v397, 4
        %v406 = vrot.slane %v398, 4
        %v407 = vrot.slane %v399, 4
        %v408 = vrot.slane %v400, 4
        %v409 = vrot.slane %v401, 4
        %vm410 = vcmp.lt.s32.totalorder %v158, 4
        %v411 = vsel %vm410, %v408, %v409
        %v412 = vsel %vm410, %v407, %v408
        %v413 = vsel %vm410, %v406, %v407
        %v414 = vsel %vm410, %v405, %v406
        %v415 = vsel %vm410, %v404, %v405
        %v416 = vsel %vm410, %v403, %v404
        %v417 = vsel %vm410, %v402, %v403
        %v418 = vsel %vm410, %v409, %v402
        %v419 = vshra.s32 %v334, 2
        %v420 = vand.u32 %v419, 1
        %vm421 = vcmp.eq.s32.totalorder %v420, 1
        %v422 = vsel %vm421, 1, 0
        %v423 = vlaneseq
        %v424 = vshrl.u32 %v423, 7
        %v425 = vsub.s32 0, %v424
        %v426 = vrot.slane %v422, %v425
        %vm427 = vcmp.eq.s32.totalorder %v426, 1
        %v428 = vsel %vm427, %v417, %v394
        %v429 = vsel %vm427, %v416, %v395
        %v430 = vsel %vm427, %v415, %v396
        %v431 = vsel %vm427, %v414, %v397
        %v432 = vsel %vm427, %v413, %v398
        %v433 = vsel %vm427, %v412, %v399
        %v434 = vsel %vm427, %v411, %v400
        %v435 = vsel %vm427, %v418, %v401
        %v436 = vshra.s32 %v334, 3
        %v437 = vand.u32 %v436, 1
        %vm438 = vcmp.eq.s32.totalorder %v437, 1
        %v439 = vsel %vm438, 1, 0
        %v440 = vlaneseq
        %v441 = vshrl.u32 %v440, 7
        %v442 = vsub.s32 0, %v441
        %v443 = vrot.slane %v439, %v442
        %vm444 = vcmp.eq.s32.totalorder %v443, 1
        %v445 = vsel %vm444, %v429, %v428
        %v446 = vsel %vm444, %v430, %v429
        %v447 = vsel %vm444, %v431, %v430
        %v448 = vsel %vm444, %v432, %v431
        %v449 = vsel %vm444, %v433, %v432
        %v450 = vsel %vm444, %v434, %v433
        %v451 = vsel %vm444, %v435, %v434
        %v452 = vsel %vm444, %v428, %v435
        %v453 = vshra.s32 %v334, 4
        %v454 = vand.u32 %v453, 1
        %vm455 = vcmp.eq.s32.totalorder %v454, 1
        %v456 = vsel %vm455, 1, 0
        %v457 = vlaneseq
        %v458 = vshrl.u32 %v457, 7
        %v459 = vsub.s32 0, %v458
        %v460 = vrot.slane %v456, %v459
        %vm461 = vcmp.eq.s32.totalorder %v460, 1
        %v462 = vsel %vm461, %v447, %v445
        %v463 = vsel %vm461, %v448, %v446
        %v464 = vsel %vm461, %v449, %v447
        %v465 = vsel %vm461, %v450, %v448
        %v466 = vsel %vm461, %v451, %v449
        %v467 = vsel %vm461, %v452, %v450
        %v468 = vsel %vm461, %v445, %v451
        %v469 = vsel %vm461, %v446, %v452
        %v470 = vshra.s32 %v334, 5
        %v471 = vand.u32 %v470, 1
        %vm472 = vcmp.eq.s32.totalorder %v471, 1
        %v473 = vsel %vm472, 1, 0
        %v474 = vlaneseq
        %v475 = vshrl.u32 %v474, 7
        %v476 = vsub.s32 0, %v475
        %v477 = vrot.slane %v473, %v476
        %vm478 = vcmp.eq.s32.totalorder %v477, 1
        %v479 = vsel %vm478, %v466, %v462
        %v480 = vsel %vm478, %v467, %v463
        %v481 = vsel %vm478, %v468, %v464
        %v482 = vsel %vm478, %v469, %v465
        %v483 = vsel %vm478, %v462, %v466
        %v484 = vsel %vm478, %v463, %v467
        %v485 = vsel %vm478, %v464, %v468
        %v486 = vsel %vm478, %v465, %v469
        %v487 = vrot.slane %v479, 1
        %v488 = vrot.slane %v480, 1
        %v489 = vrot.slane %v481, 1
        %v490 = vrot.slane %v482, 1
        %v491 = vrot.slane %v483, 1
        %v492 = vrot.slane %v484, 1
        %v493 = vrot.slane %v485, 1
        %v494 = vrot.slane %v486, 1
        %v495 = vsel %vm343, %v493, %v494
        %v496 = vsel %vm343, %v492, %v493
        %v497 = vsel %vm343, %v491, %v492
        %v498 = vsel %vm343, %v490, %v491
        %v499 = vsel %vm343, %v489, %v490
        %v500 = vsel %vm343, %v488, %v489
        %v501 = vsel %vm343, %v487, %v488
        %v502 = vsel %vm343, %v494, %v487
        %v503 = vsub.f32 1.0, %v155
        %v505 = vlaneseq
        %v506 = vshrl.u32 %v505, 7
        %v507 = vsub.s32 0, %v506
        %v508 = vrot.slane %v503, %v507
        %v510 = vsel %vm290, %v508, 0.0
        %v511 = vsel %vm291, %v508, 0.0
        %v512 = vsel %vm292, %v508, 0.0
        %v513 = vsel %vm293, %v508, 0.0
        %v514 = vsel %vm294, %v508, 0.0
        %v515 = vsel %vm295, %v508, 0.0
        %v516 = vsel %vm296, %v508, 0.0
        %v517 = vsel %vm297, %v508, 0.0
        %v519 = vlaneseq
        %v520 = vshrl.u32 %v519, 7
        %v521 = vsub.s32 0, %v520
        %v522 = vrot.slane %v155, %v521
        %v524 = vsel %vm322, %v522, 0.0
        %v525 = vsel %vm323, %v522, 0.0
        %v526 = vsel %vm324, %v522, 0.0
        %v527 = vsel %vm325, %v522, 0.0
        %v528 = vsel %vm326, %v522, 0.0
        %v529 = vsel %vm327, %v522, 0.0
        %v530 = vsel %vm328, %v522, 0.0
        %v531 = vsel %vm329, %v522, 0.0
        %v532 = vmul.f32 %v479, %v510
        %v533 = vmul.f32 %v480, %v511
        %v534 = vmul.f32 %v481, %v512
        %v535 = vmul.f32 %v482, %v513
        %v536 = vmul.f32 %v483, %v514
        %v537 = vmul.f32 %v484, %v515
        %v538 = vmul.f32 %v485, %v516
        %v539 = vmul.f32 %v486, %v517
        %v540 = vmul.f32 %v501, %v524
        %v541 = vmul.f32 %v500, %v525
        %v542 = vmul.f32 %v499, %v526
        %v543 = vmul.f32 %v498, %v527
        %v544 = vmul.f32 %v497, %v528
        %v545 = vmul.f32 %v496, %v529
        %v546 = vmul.f32 %v495, %v530
        %v547 = vmul.f32 %v502, %v531
        %v548 = vadd.f32 %v532, %v540
        %v549 = vadd.f32 %v533, %v541
        %v550 = vadd.f32 %v534, %v542
        %v551 = vadd.f32 %v535, %v543
        %v552 = vadd.f32 %v536, %v544
        %v553 = vadd.f32 %v537, %v545
        %v554 = vadd.f32 %v538, %v546
        %v555 = vadd.f32 %v539, %v547
        %vm556 = vcmask 130048
        %557 = vst.msk [vmem:[%s137] sm:$0xff] %vm556, %v548
        %558 = vst.msk [vmem:[%s137 + $0x8] sm:$0xff] %vm556, %v549
        %559 = vst.msk [vmem:[%s137 + $0x10] sm:$0xff] %vm556, %v550
        %560 = vst.msk [vmem:[%s137 + $0x18] sm:$0xff] %vm556, %v551
        %561 = vst.msk [vmem:[%s137 + $0x20] sm:$0xff] %vm556, %v552
        %562 = vst.msk [vmem:[%s137 + $0x28] sm:$0xff] %vm556, %v553
        %563 = vst.msk [vmem:[%s137 + $0x30] sm:$0xff] %vm556, %v554
        %564 = vst.msk [vmem:[%s137 + $0x38] sm:$0xff] %vm556, %v555
        %s565 = sand.u32 %s71, 1
        %s566 = scalar_lea.sflag [#allocation3], %s565
        %s567 = sand.u32 %s71, 1
        %s568 = smul.addr %s567, 64
        %s569 = scalar_lea.vmem [#allocation2], %s568
        // Predicated region
        $region29: #{branch_1_fun.1} parent=27 // pred_check
          %p570 = pneg %p81
        $region30: #{branch_1_fun.1} parent=27 // pred_check_branch
          %572 = sbr.rel (%p570) target = $region32
        $region31: #{branch_1_fun.1} parent=27 // pred_region
          %s573 = smul.u32 8, %s16
          %s575 = ssub.s32 1024, 1024
          %576 = vsyncadd %s566, %s575
          %s577 = smul.addr %s573, 128
          %s578 = scalar_lea.hbm %s2, %s577
          %s579 = sshll.u32 %s569, 4
          %s580 = int_to_ptr.vmem [resolvable:$true] %s579
          %585 = dma.vmem_to_hbm [thread:$0]  %s580, 1024, %s578, %s566, 128, 128, 8
        $region32: #{branch_1_fun.1} parent=27 // pred_fallthru
          _
      $region28: #{branch_1_fun.1} parent=5 // pred_fallthru
        _
      %p586 = scmp.le.s32.totalorder 2, %s11
      // Predicated region
      $region33: #{branch_1_fun.1} parent=5 // pred_check
        %p587 = pneg %p586
      $region34: #{branch_1_fun.1} parent=5 // pred_check_branch
        %589 = sbr.rel (%p587) target = $region36
      $region35: #{branch_1_fun.1} parent=5 // pred_region
        %s590 = ssub.s32 %s11, 2
        // Predicated region
        $region37: #{branch_1_fun.1} parent=35 // pred_check
          %p591 = pneg %p87
        $region38: #{branch_1_fun.1} parent=35 // pred_check_branch
          %593 = sbr.rel (%p591) target = $region40
        $region39: #{branch_1_fun.1} parent=35 // pred_region
          %s594 = sand.u32 %s72, 1
          %s595 = scalar_lea.sflag [#allocation3], %s594
          %s596 = sand.u32 %s72, 1
          %s597 = smul.addr %s596, 64
          %s598 = scalar_lea.vmem [#allocation2], %s597
          %599 = dma.done %s595, 1024
        $region40: #{branch_1_fun.1} parent=35 // pred_fallthru
          _
      $region36: #{branch_1_fun.1} parent=5 // pred_fallthru
        _
    $region6: #{branch_1_fun.1} parent=1 // loop_footer
      %s15 = sadd.s32 1, %s11
    $region7: #{branch_1_fun.1} parent=1 // loop_footer_branch
      %10 = sbr.rel target = $region3
    $region8: #{branch_1_fun.1} parent=1 // loop_exit
      _
    %600 = vsyncpa [#allocation3], 1
    %s601 = scalar_lea.sflag [#allocation3], 1
    %602 = vsyncpa %s601, 1

</llo_original>
